<compile_context>
chip_gen: v5e
topology: v5e:2x2
jax: 0.10.0
libtpu: 0.0.40
codegen_flags: <defaults>
</compile_context>

<pallas_src>
import jax
import jax.numpy as jnp
from jax.experimental import pallas as pl
from jax.experimental.pallas import tpu as pltpu

_GROUP = 8  # sublane group size


def simple_model_kernel(x_ref, p_ref, y_ref):
    # x_ref: (1, TN)      lane-dense batch tile (x presented as a row by the wrapper)
    # p_ref: (U_pad, 3)   stacked parameters [a | b | c*scale], U_pad % 8 == 0,
    #                     padded rows are zeros (sigmoid(0)*0 contributes nothing)
    # y_ref: (1, TN)      lane-dense output tile
    x = x_ref[...]                                   # (1, TN)
    p = p_ref[...]                                   # (U_pad, 3), tiny, loaded once
    u_pad = p.shape[0]
    n_groups = u_pad // _GROUP

    tn = x.shape[1]
    acc = jnp.zeros((_GROUP, tn), jnp.float32)
    # Unrolled group accumulation: temps stay (8, TN); contraction K == 1 so this is
    # a VPU broadcast-multiply + EUP sigmoid, no MXU (see header note).
    for g in range(n_groups):
        a_g = p[g * _GROUP:(g + 1) * _GROUP, 0:1]    # (8, 1)
        b_g = p[g * _GROUP:(g + 1) * _GROUP, 1:2]    # (8, 1)
        c_g = p[g * _GROUP:(g + 1) * _GROUP, 2:3]    # (8, 1), norm scale pre-folded
        acc = acc + jax.nn.sigmoid(a_g * x + b_g) * c_g

    # One 8-row sublane reduce; all normalization was folded into c in the wrapper.
    y_ref[...] = jnp.sum(acc, axis=0, keepdims=True).astype(y_ref.dtype)


def prepare_params(a, b, c):
    """Call-invariant parameter prep: do ONCE and reuse across forward calls."""
    a = a.astype(jnp.float32)
    b = b.astype(jnp.float32)
    c = c.astype(jnp.float32)
    # Exact f32 divide in the wrapper; folded into c so the kernel does zero
    # parameter-only math per tile.
    scale = 1.0 / ((jnp.linalg.norm(a) + jnp.linalg.norm(b)) * jnp.linalg.norm(c))
    params = jnp.concatenate([a, b, c * scale], axis=1)          # (U, 3)
    u = params.shape[0]
    u_pad = pl.cdiv(u, _GROUP) * _GROUP
    if u_pad != u:
        # Zero rows: sigmoid(0) * 0 == 0, so padding does not perturb the sum.
        params = jnp.pad(params, ((0, u_pad - u), (0, 0)))
    return params


def simple_model_forward(x, params, *, tile_n=2048):
    n = x.shape[0]
    u_pad = params.shape[0]

    # Lane-dense batch: present x (and y) as rows of length N.
    x_row = x.reshape(1, n).astype(jnp.float32)

    if n <= 128:
        # Single block equal to the full array dims (bypasses the (8,128) rule).
        tn, n_pad = n, n
    else:
        # >=2 grid steps whenever possible so both v7x TensorCores get work;
        # tiles are multiples of 128 lanes, capped at tile_n.
        tn = min(tile_n, max(128, pl.cdiv(pl.cdiv(n, 2), 128) * 128))
        n_pad = pl.cdiv(n, tn) * tn
        if n_pad != n:
            x_row = jnp.pad(x_row, ((0, 0), (0, n_pad - n)))

    grid = (n_pad // tn,)

    y_row = pl.pallas_call(
        simple_model_kernel,
        out_shape=jax.ShapeDtypeStruct((1, n_pad), jnp.float32),
        grid_spec=pltpu.PrefetchScalarGridSpec(
            num_scalar_prefetch=0,
            grid=grid,
            in_specs=[
                pl.BlockSpec((1, tn), lambda i: (0, i)),       # batch tile on lanes
                pl.BlockSpec((u_pad, 3), lambda i: (0, 0)),    # constant block index:
                                                               # fetched once, stays resident
            ],
            out_specs=pl.BlockSpec((1, tn), lambda i: (0, i)),
        ),
        compiler_params=pltpu.CompilerParams(
            dimension_semantics=("parallel",)),                # shards across 2 TCs on v7x
    )(x_row, params)

    return y_row[:, :n].reshape(n, 1)


def make_simple_model(a, b, c, *, tile_n=2048):
    """Build a jitted forward with params prepared once and cached in the closure."""
    params = prepare_params(a, b, c)

    @jax.jit
    def fwd(x):
        return simple_model_forward(x, params, tile_n=tile_n)

    return fwd


def reference_forward(x, a, b, c):
    z = jax.nn.sigmoid(x @ a.T + b.T) / (jnp.linalg.norm(a) + jnp.linalg.norm(b))
    return (z @ c) / jnp.linalg.norm(c)


if __name__ == "__main__":
    num_units = 32
    batch = 8

    key = jax.random.PRNGKey(0)
    kx, ka, kb, kc = jax.random.split(key, 4)

    # Deterministic synthetic parameters (PyTorch used torch.randn of same shapes).
    a = jax.random.normal(ka, (num_units, 1), dtype=jnp.float32)
    b = jax.random.normal(kb, (num_units, 1), dtype=jnp.float32)
    c = jax.random.normal(kc, (num_units, 1), dtype=jnp.float32)
    x = jax.random.normal(kx, (batch, 1), dtype=jnp.float32)

    fwd = make_simple_model(a, b, c)
    y = jax.block_until_ready(fwd(x))

    y_ref = reference_forward(x, a, b, c)
    assert y.shape == (batch, 1)
    assert jnp.allclose(y, y_ref, atol=1e-5, rtol=1e-5), (y, y_ref)

    print("KERNEL_OK")
</pallas_src>

<mosaic_0001>
module attributes {stable_mosaic.version = 11 : i64} {
  func.func @simple_model_kernel(%arg0: i32, %arg1: memref<1x8xf32, #tpu.memory_space<vmem>>, %arg2: memref<32x3xf32, #tpu.memory_space<vmem>>, %arg3: memref<1x8xf32, #tpu.memory_space<vmem>>) attributes {dimension_semantics = [#tpu.dimension_semantics<parallel>], iteration_bounds = array<i64: 1>, scalar_prefetch = 0 : i64, scratch_operands = 0 : i64, tpu.core_type = #tpu.core_type<tc>, window_params = [{transform_indices = @transform_0, window_bounds = array<i64: 1, 8>}, {pipeline_mode = #tpu.pipeline_mode<synchronous>, transform_indices = @transform_1, window_bounds = array<i64: 32, 3>}, {transform_indices = @transform_2, window_bounds = array<i64: 1, 8>}]} {
    %c0 = arith.constant 0 : index
    %c0_0 = arith.constant 0 : index
    %0 = vector.load %arg1[%c0, %c0_0] : memref<1x8xf32, #tpu.memory_space<vmem>>, vector<1x8xf32>
    %c0_1 = arith.constant 0 : index
    %c0_2 = arith.constant 0 : index
    %1 = vector.load %arg2[%c0_1, %c0_2] : memref<32x3xf32, #tpu.memory_space<vmem>>, vector<32x3xf32>
    %cst = arith.constant 0.000000e+00 : f32
    %2 = vector.broadcast %cst : f32 to vector<8x8xf32>
    %3 = vector.extract_strided_slice %1 {offsets = [0, 0], sizes = [8, 1], strides = [1, 1]} : vector<32x3xf32> to vector<8x1xf32>
    %4 = vector.extract_strided_slice %1 {offsets = [0, 1], sizes = [8, 1], strides = [1, 1]} : vector<32x3xf32> to vector<8x1xf32>
    %5 = vector.extract_strided_slice %1 {offsets = [0, 2], sizes = [8, 1], strides = [1, 1]} : vector<32x3xf32> to vector<8x1xf32>
    %6 = vector.broadcast %3 : vector<8x1xf32> to vector<8x8xf32>
    %7 = vector.broadcast %0 : vector<1x8xf32> to vector<8x8xf32>
    %8 = arith.mulf %6, %7 : vector<8x8xf32>
    %9 = vector.broadcast %4 : vector<8x1xf32> to vector<8x8xf32>
    %10 = arith.addf %8, %9 : vector<8x8xf32>
    %11 = arith.negf %10 : vector<8x8xf32>
    %12 = math.exp %11 : vector<8x8xf32>
    %cst_3 = arith.constant 1.000000e+00 : f32
    %13 = vector.broadcast %cst_3 : f32 to vector<8x8xf32>
    %14 = arith.addf %13, %12 : vector<8x8xf32>
    %15 = arith.divf %13, %14 : vector<8x8xf32>
    %16 = vector.broadcast %5 : vector<8x1xf32> to vector<8x8xf32>
    %17 = arith.mulf %15, %16 : vector<8x8xf32>
    %18 = arith.addf %2, %17 : vector<8x8xf32>
    %19 = vector.extract_strided_slice %1 {offsets = [8, 0], sizes = [8, 1], strides = [1, 1]} : vector<32x3xf32> to vector<8x1xf32>
    %20 = vector.extract_strided_slice %1 {offsets = [8, 1], sizes = [8, 1], strides = [1, 1]} : vector<32x3xf32> to vector<8x1xf32>
    %21 = vector.extract_strided_slice %1 {offsets = [8, 2], sizes = [8, 1], strides = [1, 1]} : vector<32x3xf32> to vector<8x1xf32>
    %22 = vector.broadcast %19 : vector<8x1xf32> to vector<8x8xf32>
    %23 = vector.broadcast %0 : vector<1x8xf32> to vector<8x8xf32>
    %24 = arith.mulf %22, %23 : vector<8x8xf32>
    %25 = vector.broadcast %20 : vector<8x1xf32> to vector<8x8xf32>
    %26 = arith.addf %24, %25 : vector<8x8xf32>
    %27 = arith.negf %26 : vector<8x8xf32>
    %28 = math.exp %27 : vector<8x8xf32>
    %cst_4 = arith.constant 1.000000e+00 : f32
    %29 = vector.broadcast %cst_4 : f32 to vector<8x8xf32>
    %30 = arith.addf %29, %28 : vector<8x8xf32>
    %31 = arith.divf %29, %30 : vector<8x8xf32>
    %32 = vector.broadcast %21 : vector<8x1xf32> to vector<8x8xf32>
    %33 = arith.mulf %31, %32 : vector<8x8xf32>
    %34 = arith.addf %18, %33 : vector<8x8xf32>
    %35 = vector.extract_strided_slice %1 {offsets = [16, 0], sizes = [8, 1], strides = [1, 1]} : vector<32x3xf32> to vector<8x1xf32>
    %36 = vector.extract_strided_slice %1 {offsets = [16, 1], sizes = [8, 1], strides = [1, 1]} : vector<32x3xf32> to vector<8x1xf32>
    %37 = vector.extract_strided_slice %1 {offsets = [16, 2], sizes = [8, 1], strides = [1, 1]} : vector<32x3xf32> to vector<8x1xf32>
    %38 = vector.broadcast %35 : vector<8x1xf32> to vector<8x8xf32>
    %39 = vector.broadcast %0 : vector<1x8xf32> to vector<8x8xf32>
    %40 = arith.mulf %38, %39 : vector<8x8xf32>
    %41 = vector.broadcast %36 : vector<8x1xf32> to vector<8x8xf32>
    %42 = arith.addf %40, %41 : vector<8x8xf32>
    %43 = arith.negf %42 : vector<8x8xf32>
    %44 = math.exp %43 : vector<8x8xf32>
    %cst_5 = arith.constant 1.000000e+00 : f32
    %45 = vector.broadcast %cst_5 : f32 to vector<8x8xf32>
    %46 = arith.addf %45, %44 : vector<8x8xf32>
    %47 = arith.divf %45, %46 : vector<8x8xf32>
    %48 = vector.broadcast %37 : vector<8x1xf32> to vector<8x8xf32>
    %49 = arith.mulf %47, %48 : vector<8x8xf32>
    %50 = arith.addf %34, %49 : vector<8x8xf32>
    %51 = vector.extract_strided_slice %1 {offsets = [24, 0], sizes = [8, 1], strides = [1, 1]} : vector<32x3xf32> to vector<8x1xf32>
    %52 = vector.extract_strided_slice %1 {offsets = [24, 1], sizes = [8, 1], strides = [1, 1]} : vector<32x3xf32> to vector<8x1xf32>
    %53 = vector.extract_strided_slice %1 {offsets = [24, 2], sizes = [8, 1], strides = [1, 1]} : vector<32x3xf32> to vector<8x1xf32>
    %54 = vector.broadcast %51 : vector<8x1xf32> to vector<8x8xf32>
    %55 = vector.broadcast %0 : vector<1x8xf32> to vector<8x8xf32>
    %56 = arith.mulf %54, %55 : vector<8x8xf32>
    %57 = vector.broadcast %52 : vector<8x1xf32> to vector<8x8xf32>
    %58 = arith.addf %56, %57 : vector<8x8xf32>
    %59 = arith.negf %58 : vector<8x8xf32>
    %60 = math.exp %59 : vector<8x8xf32>
    %cst_6 = arith.constant 1.000000e+00 : f32
    %61 = vector.broadcast %cst_6 : f32 to vector<8x8xf32>
    %62 = arith.addf %61, %60 : vector<8x8xf32>
    %63 = arith.divf %61, %62 : vector<8x8xf32>
    %64 = vector.broadcast %53 : vector<8x1xf32> to vector<8x8xf32>
    %65 = arith.mulf %63, %64 : vector<8x8xf32>
    %66 = arith.addf %50, %65 : vector<8x8xf32>
    %cst_7 = arith.constant dense<0.000000e+00> : vector<8xf32>
    %67 = vector.multi_reduction <add>, %66, %cst_7 [0] : vector<8x8xf32> to vector<8xf32>
    %68 = vector.shape_cast %67 : vector<8xf32> to vector<1x8xf32>
    %c0_8 = arith.constant 0 : index
    %c0_9 = arith.constant 0 : index
    %69 = vector.load %arg3[%c0_8, %c0_9] : memref<1x8xf32, #tpu.memory_space<vmem>>, vector<1x8xf32>
    tpu.vector_store %arg3[%c0_8, %c0_9], %68 {strides = array<i32>} : memref<1x8xf32, #tpu.memory_space<vmem>>, vector<1x8xf32>,
    return
  }
  func.func @transform_0(%arg0: i32) -> (i32, i32) {
    %c0_i32 = arith.constant 0 : i32
    %c0_i32_0 = arith.constant 0 : i32
    return %c0_i32, %arg0 : i32, i32
  }
  func.func @transform_1(%arg0: i32) -> (i32, i32) {
    %c0_i32 = arith.constant 0 : i32
    %c0_i32_0 = arith.constant 0 : i32
    %c0_i32_1 = arith.constant 0 : i32
    return %c0_i32, %c0_i32_0 : i32, i32
  }
  func.func @transform_2(%arg0: i32) -> (i32, i32) {
    %c0_i32 = arith.constant 0 : i32
    %c0_i32_0 = arith.constant 0 : i32
    return %c0_i32, %arg0 : i32, i32
  }
}

</mosaic_0001>

<llo_original>
// kernel: fwd.1
$region0: #{fwd.1}
  #allocation0 [shape = 'u32[]', space=smem, size = 0x4, offset = 0x4, fixed_abs, tag = 'smem constant byte address 0x4 - core index']
  #allocation1 [shape = 'u32[72,128]{1,0:T(1,128)}', space=vmem, size = 0x9000, scoped, tag = 'internal scratch']
  %s0 = inlined_call_operand.hbm [shape: f32[1,8], index: 0, kind: input, shape index: {}]
  %s1 = inlined_call_operand.hbm [shape: f32[32,3], index: 1, kind: input, shape index: {}]
  %s2 = inlined_call_operand.hbm [shape: f32[1,8], index: 2, kind: output, shape index: {}]
  %s3 = sld [smem:[#allocation0]]
  $region26: #{fwd.1} parent=0
    _
  %s5 = ssub.s32 1, %s3
  %s6 = scalar_select 0, %s5, %s3
  $region1: #{fwd.1} parent=0
    #allocation2 [shape = 'u8[512]{0}', space=vmem, size = 0x400, scoped, tag = 'input window, operand 0, single buffered']
    #allocation3 [shape = 's32[1]{0}', space=sflag, size = 0x4, scoped, tag = 'scoped memory for fwd.1']
    #allocation4 [shape = 's32[1]{0}', space=sflag, size = 0x4, scoped, tag = 'scoped memory for fwd.1']
    #allocation5 [shape = 'u8[16384]{0}', space=vmem, size = 0x4000, scoped, tag = 'input window, operand 1, single buffered']
    #allocation6 [shape = 's32[1]{0}', space=sflag, size = 0x4, scoped, tag = 'scoped memory for fwd.1']
    #allocation7 [shape = 'u8[512]{0}', space=vmem, size = 0x400, scoped, tag = 'output window, operand 0, single buffered']
    %7 = vsyncpa [#allocation3], 0
    %8 = vsyncpa [#allocation6], 0
    %9 = vsyncpa [#allocation4], 0
    // Predicated region
    $region2: #{fwd.1} parent=1 // pred_check
      _
    $region3: #{fwd.1} parent=1 // pred_check_branch
      %11 = sbr.rel (0) target = $region5
    $region4: #{fwd.1} parent=1 // pred_region
      %13 = vsyncadd [#allocation3], 0
      %s15 = sshll.u32 %s0, 4
      %s16 = int_to_ptr.hbm [resolvable:$true] %s15
      %s17 = sshll.u32 [#allocation2], 4
      %s18 = int_to_ptr.vmem [resolvable:$true] %s17
      %20 = dma.hbm_to_vmem [thread:$0]  %s16, 16, %s18, [#allocation3]
    $region5: #{fwd.1} parent=1 // pred_fallthru
      _
    // Predicated region
    $region6: #{fwd.1} parent=1 // pred_check
      _
    $region7: #{fwd.1} parent=1 // pred_check_branch
      %22 = sbr.rel (0) target = $region9
    $region8: #{fwd.1} parent=1 // pred_region
      %24 = vsyncadd [#allocation6], 0
      %s25 = sshll.u32 %s1, 4
      %s26 = int_to_ptr.hbm [resolvable:$true] %s25
      %s27 = sshll.u32 [#allocation5], 4
      %s28 = int_to_ptr.vmem [resolvable:$true] %s27
      %33 = dma.hbm_to_vmem [thread:$0]  %s26, 512, %s28, [#allocation6], 128, 128, 8
    $region9: #{fwd.1} parent=1 // pred_fallthru
      _
    // Predicated region
    $region10: #{fwd.1} parent=1 // pred_check
      _
    $region11: #{fwd.1} parent=1 // pred_check_branch
      %35 = sbr.rel (0) target = $region13
    $region12: #{fwd.1} parent=1 // pred_region
      %37 = dma.done [#allocation3], 16
    $region13: #{fwd.1} parent=1 // pred_fallthru
      _
    // Predicated region
    $region14: #{fwd.1} parent=1 // pred_check
      _
    $region15: #{fwd.1} parent=1 // pred_check_branch
      %39 = sbr.rel (0) target = $region17
    $region16: #{fwd.1} parent=1 // pred_region
      %41 = dma.done [#allocation6], 512
    $region17: #{fwd.1} parent=1 // pred_fallthru
      _
    %v42 = vld [vmem:[#allocation2] sm:$0x1]
    %v43 = vld [vmem:[#allocation5] sm:$0xff]
    %v44 = vld [vmem:[#allocation5 + $0x8] sm:$0xff]
    %v45 = vld [vmem:[#allocation5 + $0x10] sm:$0xff]
    %v46 = vld [vmem:[#allocation5 + $0x18] sm:$0xff]
    %48 = vset.pattern.permute.xlu0 0
    %49 = vperm.xlu0 %48, %v43
    %v50 = vpop.permute.xlu0 %49
    %v53 = vperm.slane %v42, 0
    %v55 = vmul.f32 %v50, %v53
    %56 = vset.pattern.permute.xlu0 1
    %57 = vperm.xlu0 %56, %v43
    %v58 = vpop.permute.xlu0 %57
    %v60 = vadd.f32 %v55, %v58
    %v61 = vxor.u32 %v60, 2147483648
    %v62 = vmul.f32 %v61, 1.442695
    %v63 = vpow.pop %v62
    %v64 = vadd.f32 %v63, 1.0
    %v65 = vrcp.pop %v64
    %v66 = vmul.f32 %v64, %v65
    %v67 = vsub.f32 1.0, %v66
    %v68 = vmul.f32 %v65, %v67
    %v69 = vadd.f32 %v65, %v68
    %vm70 = vweird.f32 %v64
    %vm71 = vweird.f32 %v65
    %vm72 = vmor %vm70, %vm71
    %v73 = vsel %vm72, %v65, %v69
    %v74 = vand.u32 2147483647, %v64
    %vm75 = vcmp.eq.f32.partialorder %v74, 8.507059e+37
    %v76 = vand.u32 %v64, 2147483648
    %v77 = vor.u32 1.1754944e-38, %v76
    %v78 = vsel %vm75, %v77, %v73
    %v79 = vmul.f32 1.0, %v78
    %80 = vset.pattern.permute.xlu0 2
    %81 = vperm.xlu0 %80, %v43
    %v82 = vpop.permute.xlu0 %81
    %v84 = vmul.f32 %v79, %v82
    %v85 = vadd.f32 %v84, 0.0
    %87 = vset.pattern.permute.xlu0 0
    %88 = vperm.xlu0 %87, %v44
    %v89 = vpop.permute.xlu0 %88
    %v91 = vmul.f32 %v89, %v53
    %92 = vset.pattern.permute.xlu0 1
    %93 = vperm.xlu0 %92, %v44
    %v94 = vpop.permute.xlu0 %93
    %v96 = vadd.f32 %v91, %v94
    %v97 = vxor.u32 %v96, 2147483648
    %v98 = vmul.f32 %v97, 1.442695
    %v99 = vpow.pop %v98
    %v100 = vadd.f32 %v99, 1.0
    %v101 = vrcp.pop %v100
    %v102 = vmul.f32 %v100, %v101
    %v103 = vsub.f32 1.0, %v102
    %v104 = vmul.f32 %v101, %v103
    %v105 = vadd.f32 %v101, %v104
    %vm106 = vweird.f32 %v100
    %vm107 = vweird.f32 %v101
    %vm108 = vmor %vm106, %vm107
    %v109 = vsel %vm108, %v101, %v105
    %v110 = vand.u32 2147483647, %v100
    %vm111 = vcmp.eq.f32.partialorder %v110, 8.507059e+37
    %v112 = vand.u32 %v100, 2147483648
    %v113 = vor.u32 1.1754944e-38, %v112
    %v114 = vsel %vm111, %v113, %v109
    %v115 = vmul.f32 1.0, %v114
    %116 = vset.pattern.permute.xlu0 2
    %117 = vperm.xlu0 %116, %v44
    %v118 = vpop.permute.xlu0 %117
    %v120 = vmul.f32 %v115, %v118
    %v121 = vadd.f32 %v85, %v120
    %123 = vset.pattern.permute.xlu0 0
    %124 = vperm.xlu0 %123, %v45
    %v125 = vpop.permute.xlu0 %124
    %v127 = vmul.f32 %v125, %v53
    %128 = vset.pattern.permute.xlu0 1
    %129 = vperm.xlu0 %128, %v45
    %v130 = vpop.permute.xlu0 %129
    %v132 = vadd.f32 %v127, %v130
    %v133 = vxor.u32 %v132, 2147483648
    %v134 = vmul.f32 %v133, 1.442695
    %v135 = vpow.pop %v134
    %v136 = vadd.f32 %v135, 1.0
    %v137 = vrcp.pop %v136
    %v138 = vmul.f32 %v136, %v137
    %v139 = vsub.f32 1.0, %v138
    %v140 = vmul.f32 %v137, %v139
    %v141 = vadd.f32 %v137, %v140
    %vm142 = vweird.f32 %v136
    %vm143 = vweird.f32 %v137
    %vm144 = vmor %vm142, %vm143
    %v145 = vsel %vm144, %v137, %v141
    %v146 = vand.u32 2147483647, %v136
    %vm147 = vcmp.eq.f32.partialorder %v146, 8.507059e+37
    %v148 = vand.u32 %v136, 2147483648
    %v149 = vor.u32 1.1754944e-38, %v148
    %v150 = vsel %vm147, %v149, %v145
    %v151 = vmul.f32 1.0, %v150
    %152 = vset.pattern.permute.xlu0 2
    %153 = vperm.xlu0 %152, %v45
    %v154 = vpop.permute.xlu0 %153
    %v156 = vmul.f32 %v151, %v154
    %v157 = vadd.f32 %v121, %v156
    %159 = vset.pattern.permute.xlu0 0
    %160 = vperm.xlu0 %159, %v46
    %v161 = vpop.permute.xlu0 %160
    %v163 = vmul.f32 %v161, %v53
    %164 = vset.pattern.permute.xlu0 1
    %165 = vperm.xlu0 %164, %v46
    %v166 = vpop.permute.xlu0 %165
    %v168 = vadd.f32 %v163, %v166
    %v169 = vxor.u32 %v168, 2147483648
    %v170 = vmul.f32 %v169, 1.442695
    %v171 = vpow.pop %v170
    %v172 = vadd.f32 %v171, 1.0
    %v173 = vrcp.pop %v172
    %v174 = vmul.f32 %v172, %v173
    %v175 = vsub.f32 1.0, %v174
    %v176 = vmul.f32 %v173, %v175
    %v177 = vadd.f32 %v173, %v176
    %vm178 = vweird.f32 %v172
    %vm179 = vweird.f32 %v173
    %vm180 = vmor %vm178, %vm179
    %v181 = vsel %vm180, %v173, %v177
    %v182 = vand.u32 2147483647, %v172
    %vm183 = vcmp.eq.f32.partialorder %v182, 8.507059e+37
    %v184 = vand.u32 %v172, 2147483648
    %v185 = vor.u32 1.1754944e-38, %v184
    %v186 = vsel %vm183, %v185, %v181
    %v187 = vmul.f32 1.0, %v186
    %188 = vset.pattern.permute.xlu0 2
    %189 = vperm.xlu0 %188, %v46
    %v190 = vpop.permute.xlu0 %189
    %v192 = vmul.f32 %v187, %v190
    %v193 = vadd.f32 %v157, %v192
    %vm194 = vcmask 64512
    %v195 = vsel %vm194, %v193, 0.0
    %v196 = vrot.slane %v195, 4
    %v197 = vadd.f32 %v195, %v196
    %v198 = vrot.slane %v197, 2
    %v199 = vadd.f32 %v197, %v198
    %v200 = vrot.slane %v199, 1
    %v201 = vadd.f32 %v199, %v200
    %vm202 = vcmask 57344
    %203 = vst.msk [vmem:[#allocation7] sm:$0x1] %vm202, %v201
    // Predicated region
    $region18: #{fwd.1} parent=1 // pred_check
      _
    $region19: #{fwd.1} parent=1 // pred_check_branch
      %205 = sbr.rel (0) target = $region21
    $region20: #{fwd.1} parent=1 // pred_region
      %207 = vsyncadd [#allocation4], 0
      %s209 = sshll.u32 [#allocation7], 4
      %s210 = int_to_ptr.vmem [resolvable:$true] %s209
      %s211 = sshll.u32 %s2, 4
      %s212 = int_to_ptr.hbm [resolvable:$true] %s211
      %214 = dma.vmem_to_hbm [thread:$0]  %s210, 16, %s212, [#allocation4]
    $region21: #{fwd.1} parent=1 // pred_fallthru
      _
    // Predicated region
    $region22: #{fwd.1} parent=1 // pred_check
      _
    $region23: #{fwd.1} parent=1 // pred_check_branch
      %216 = sbr.rel (0) target = $region25
    $region24: #{fwd.1} parent=1 // pred_region
      %218 = dma.done [#allocation4], 16
    $region25: #{fwd.1} parent=1 // pred_fallthru
      _
    %219 = vsyncpa [#allocation3], 1
    %220 = vsyncpa [#allocation6], 1
    %221 = vsyncpa [#allocation4], 1

</llo_original>
